<compile_context>
chip_gen: v5e
topology: v5e:2x2
jax: 0.10.0
libtpu: 0.0.40
codegen_flags: <defaults>
</compile_context>

<pallas_src>
import functools

import jax
import jax.numpy as jnp
import numpy as np
from jax import lax
from jax.experimental import pallas as pl
from jax.experimental.pallas import tpu as pltpu

BN_EPS = 1e-5


def _round_up(x, m):
    return ((x + m - 1) // m) * m


def _apply_act(y, act):
    if act == "silu":
        return y * jax.nn.sigmoid(y)
    return y


# --------------------------- Pallas kernels ---------------------------

def _mm_bn_act_kernel(x_ref, w_ref, s_ref, b_ref, o_ref, *, act):
    """Single-K-step fused matmul + per-channel affine (folded BN / bias) + activation."""
    y = jnp.dot(x_ref[...], w_ref[...], preferred_element_type=jnp.float32)
    y = y * s_ref[...] + b_ref[...]
    o_ref[...] = _apply_act(y, act).astype(o_ref.dtype)


def _mm_bn_act_kacc_kernel(x_ref, w_ref, s_ref, b_ref, o_ref, acc_ref, *, act):
    """K-tiled variant (large K): f32 accumulator scratch, epilogue on the last K step."""
    @pl.when(pl.program_id(1) == 0)
    def _():
        acc_ref[...] = jnp.zeros_like(acc_ref)

    acc_ref[...] += jnp.dot(x_ref[...], w_ref[...], preferred_element_type=jnp.float32)

    @pl.when(pl.program_id(1) == pl.num_programs(1) - 1)
    def _():
        y = acc_ref[...] * s_ref[...] + b_ref[...]
        o_ref[...] = _apply_act(y, act).astype(o_ref.dtype)


def matmul_bn_act(x, w, scale, bias, act="silu", out_dtype=jnp.float32, tm_max=256):
    """(M, K) @ (K, N) in bf16 on the MXU, then per-column scale/bias, then activation."""
    M, K = x.shape
    Kw, N = w.shape
    assert K == Kw
    xb = x.astype(jnp.bfloat16)
    wb = w.astype(jnp.bfloat16)
    sb = scale.astype(jnp.float32).reshape(1, N)
    bb = bias.astype(jnp.float32).reshape(1, N)

    # Tile only M. K and N stay full-width (no pad / no slice copies, lane-dense output blocks).
    if M > tm_max:
        tm = tm_max
    elif M >= 16:
        tm = _round_up((M + 1) // 2, 8)      # >= 2 parallel M tiles keeps both v7x TCs busy
    else:
        tm = _round_up(max(M, 1), 8)
    Mp = _round_up(M, tm)
    if Mp != M:
        xb = jnp.pad(xb, ((0, Mp - M), (0, 0)))
    grid_m = Mp // tm

    osize = jnp.dtype(out_dtype).itemsize
    vmem_est = 2 * (tm * K * 2 + K * N * 2 + tm * N * osize + 2 * N * 4)

    if vmem_est <= (20 << 20):
        # Single K step: no reduction grid axis, no accumulator scratch.
        out = pl.pallas_call(
            functools.partial(_mm_bn_act_kernel, act=act),
            out_shape=jax.ShapeDtypeStruct((Mp, N), out_dtype),
            grid_spec=pltpu.PrefetchScalarGridSpec(
                num_scalar_prefetch=0,
                grid=(grid_m,),
                in_specs=[
                    pl.BlockSpec((tm, K), lambda i: (i, 0)),
                    pl.BlockSpec((K, N), lambda i: (0, 0)),
                    pl.BlockSpec((1, N), lambda i: (0, 0)),
                    pl.BlockSpec((1, N), lambda i: (0, 0)),
                ],
                out_specs=pl.BlockSpec((tm, N), lambda i: (i, 0)),
            ),
            compiler_params=pltpu.CompilerParams(dimension_semantics=("parallel",)),
        )(xb, wb, sb, bb)
    else:
        tk = 512
        Kp = _round_up(K, tk)
        if Kp != K:
            xb = jnp.pad(xb, ((0, 0), (0, Kp - K)))
            wb = jnp.pad(wb, ((0, Kp - K), (0, 0)))
        out = pl.pallas_call(
            functools.partial(_mm_bn_act_kacc_kernel, act=act),
            out_shape=jax.ShapeDtypeStruct((Mp, N), out_dtype),
            grid_spec=pltpu.PrefetchScalarGridSpec(
                num_scalar_prefetch=0,
                grid=(grid_m, Kp // tk),
                in_specs=[
                    pl.BlockSpec((tm, tk), lambda i, k: (i, k)),
                    pl.BlockSpec((tk, N), lambda i, k: (k, 0)),
                    pl.BlockSpec((1, N), lambda i, k: (0, 0)),
                    pl.BlockSpec((1, N), lambda i, k: (0, 0)),
                ],
                out_specs=pl.BlockSpec((tm, N), lambda i, k: (i, 0)),
                scratch_shapes=[pltpu.VMEM((tm, N), jnp.float32)],
            ),
            compiler_params=pltpu.CompilerParams(
                dimension_semantics=("parallel", "arbitrary")),
        )(xb, wb, sb, bb)

    return out[:M] if Mp != M else out


def _dw_bn_act_kernel(x_ref, w_ref, s_ref, b_ref, o_ref, *, k, stride, act):
    """Depthwise conv + BN affine + activation for one batch element (whole image in VMEM)."""
    _, ho, wo, _ = o_ref.shape
    # Depthwise math stays f32 on the VPU (v5e has no bf16 VALU datapath).
    w = w_ref[...].astype(jnp.float32)          # (k*k, C), loaded once outside the tap loop
    acc = None
    for ky in range(k):
        for kx in range(k):
            p = (ky % stride) * stride + (kx % stride)       # phase index (space-to-depth)
            qy, qx = ky // stride, kx // stride
            tap = x_ref[p, qy:qy + ho, qx:qx + wo, :].astype(jnp.float32)
            term = tap * w[ky * k + kx]
            acc = term if acc is None else acc + term
    y = acc * s_ref[...] + b_ref[...]
    o_ref[0] = _apply_act(y, act).astype(o_ref.dtype)


def depthwise_conv_bn_act(x, w_taps, scale, bias, k, stride, pad, act="silu",
                          out_dtype=jnp.float32):
    """x: (N,H,W,C) NHWC. w_taps: (k*k, C). Fused depthwise conv + BN affine + activation."""
    N, H, W, C = x.shape
    s = stride
    Ho = (H + 2 * pad - k) // s + 1
    Wo = (W + 2 * pad - k) // s + 1
    q = (k - 1) // s
    Hc, Wc = Ho + q, Wo + q
    He, We = s * Hc, s * Wc
    # One zero-padded copy of the activation (conv padding + phase rounding); no k^2 duplication.
    xp = jnp.pad(x, ((0, 0),
                     (pad, max(0, He - H - pad)),
                     (pad, max(0, We - W - pad)),
                     (0, 0)))
    xp = xp[:, :He, :We, :]
    # Space-to-depth by the conv stride so every tap becomes a static in-kernel slice.
    xr = xp.reshape(N, Hc, s, Wc, s, C).transpose(0, 2, 4, 1, 3, 5)
    xr = xr.reshape(N * s * s, Hc, Wc, C)
    wr = w_taps.astype(jnp.float32)
    sb = scale.astype(jnp.float32).reshape(1, C)
    bb = bias.astype(jnp.float32).reshape(1, C)
    # TODO(synk): for large spatial extents the per-batch block should be split into
    #             halo'd row tiles; whole-image blocks are fine at these resolutions.
    out = pl.pallas_call(
        functools.partial(_dw_bn_act_kernel, k=k, stride=s, act=act),
        out_shape=jax.ShapeDtypeStruct((N, Ho, Wo, C), out_dtype),
        grid_spec=pltpu.PrefetchScalarGridSpec(
            num_scalar_prefetch=0,
            grid=(N,),
            in_specs=[
                pl.BlockSpec((s * s, Hc, Wc, C), lambda n: (n, 0, 0, 0)),
                pl.BlockSpec((k * k, C), lambda n: (0, 0)),
                pl.BlockSpec((1, C), lambda n: (0, 0)),
                pl.BlockSpec((1, C), lambda n: (0, 0)),
            ],
            out_specs=pl.BlockSpec((1, Ho, Wo, C), lambda n: (n, 0, 0, 0)),
        ),
        compiler_params=pltpu.CompilerParams(dimension_semantics=("parallel",)),
    )(xr, wr, sb, bb)
    return out


# --------------------------- JAX glue ---------------------------

def _shifted_views(x, k, stride, pad):
    """x: (N,H,W,C). Returns k*k shifted/strided views, each (N,Ho,Wo,C)."""
    N, H, W, C = x.shape
    xp = jnp.pad(x, ((0, 0), (pad, pad), (pad, pad), (0, 0)))
    Ho = (H + 2 * pad - k) // stride + 1
    Wo = (W + 2 * pad - k) // stride + 1
    views = [xp[:, ky:ky + stride * Ho:stride, kx:kx + stride * Wo:stride, :]
             for ky in range(k) for kx in range(k)]
    return views, Ho, Wo


def _dense_conv_bn_act(x, w_mat, scale, bias, k, stride, pad, act, out_dtype):
    """Dense (groups within this call = 1) conv as im2col + fused MXU matmul."""
    N, H, W, C = x.shape
    xb = x.astype(jnp.bfloat16)                       # bf16 activations: halves HBM, feeds bf16 MXU
    if k == 1 and stride == 1 and pad == 0:
        cols, Ho, Wo = xb.reshape(N * H * W, C), H, W
    else:
        # TODO(synk): a halo-blocked dense-conv kernel would avoid the k^2 im2col duplication for
        #             large-cin k>1 convs; this module's common uses are 1x1 convs and tiny-cin stems.
        views, Ho, Wo = _shifted_views(xb, k, stride, pad)
        cols = jnp.concatenate(views, axis=-1).reshape(N * Ho * Wo, k * k * C)
    y = matmul_bn_act(cols, w_mat, scale, bias, act, out_dtype)
    return y.reshape(N, Ho, Wo, -1)


# --------------------------- Module: params + forward ---------------------------

def make_conv_bn_act(seed, channels_in, channels_out, k_size=3, stride_len=1, pad=0,
                     groupings=1, use_bn=True, use_activation=True, use_bias=False):
    """Deterministic synthetic parameters for ConvBatchNormActivation (eval-mode BN folded)."""
    key = jax.random.PRNGKey(seed)
    ks = jax.random.split(key, 6)
    cin_g = channels_in // groupings
    w = (jax.random.normal(ks[0], (k_size, k_size, cin_g, channels_out), jnp.float32)
         / np.sqrt(cin_g * k_size * k_size))
    conv_b = (jax.random.normal(ks[1], (channels_out,), jnp.float32) * 0.1
              if use_bias else jnp.zeros((channels_out,), jnp.float32))
    if use_bn:
        gamma = 1.0 + 0.1 * jax.random.normal(ks[2], (channels_out,), jnp.float32)
        beta = 0.1 * jax.random.normal(ks[3], (channels_out,), jnp.float32)
        mean = 0.1 * jax.random.normal(ks[4], (channels_out,), jnp.float32)
        var = jnp.abs(1.0 + 0.1 * jax.random.normal(ks[5], (channels_out,), jnp.float32))
        scale = gamma / jnp.sqrt(var + BN_EPS)
        shift = beta - mean * scale
    else:
        scale = jnp.ones((channels_out,), jnp.float32)
        shift = jnp.zeros((channels_out,), jnp.float32)
    return {
        "w_hwio": w, "scale": scale, "bias": conv_b * scale + shift,
        "k": k_size, "stride": stride_len, "pad": pad, "groups": groupings,
        "cin": channels_in, "cout": channels_out,
        "act": "silu" if use_activation else "none",
    }


def conv_bn_act_forward(p, x_nchw, out_dtype=jnp.float32):
    """Forward pass of ConvBatchNormActivation. NCHW in -> NCHW out."""
    x = jnp.transpose(x_nchw, (0, 2, 3, 1))           # NCHW -> NHWC (channels on the 128 lanes)
    k, s, pad, g = p["k"], p["stride"], p["pad"], p["groups"]
    cin, cout = p["cin"], p["cout"]
    if g == cin and g == cout:
        # Depthwise conv: fused VPU kernel, taps generated in-kernel.
        w = p["w_hwio"].reshape(k * k, cout)
        y = depthwise_conv_bn_act(x, w, p["scale"], p["bias"], k, s, pad, p["act"], out_dtype)
    elif g == 1:
        w = p["w_hwio"].reshape(k * k * cin, cout)
        y = _dense_conv_bn_act(x, w, p["scale"], p["bias"], k, s, pad, p["act"], out_dtype)
    else:
        # General grouped conv: run the dense MXU path per group (correct, not a single fused kernel).
        cin_g, cout_g = cin // g, cout // g
        outs = []
        for gi in range(g):
            wg = p["w_hwio"][..., gi * cout_g:(gi + 1) * cout_g].reshape(k * k * cin_g, cout_g)
            outs.append(_dense_conv_bn_act(
                x[..., gi * cin_g:(gi + 1) * cin_g], wg,
                p["scale"][gi * cout_g:(gi + 1) * cout_g],
                p["bias"][gi * cout_g:(gi + 1) * cout_g],
                k, s, pad, p["act"], out_dtype))
        y = jnp.concatenate(outs, axis=-1)
    return jnp.transpose(y, (0, 3, 1, 2))             # NHWC -> NCHW


def conv_bn_act_reference(p, x_nchw):
    """Plain-JAX reference (eval-mode BN folded), mirroring the kernel's bf16 input rounding."""
    x = jnp.transpose(x_nchw, (0, 2, 3, 1)).astype(jnp.float32)
    w = p["w_hwio"].astype(jnp.float32)
    depthwise = (p["groups"] == p["cin"] == p["cout"])
    if not depthwise:                                  # MXU paths round inputs/weights to bf16
        x = x.astype(jnp.bfloat16).astype(jnp.float32)
        w = w.astype(jnp.bfloat16).astype(jnp.float32)
    y = lax.conv_general_dilated(
        x, w, window_strides=(p["stride"], p["stride"]),
        padding=[(p["pad"], p["pad"]), (p["pad"], p["pad"])],
        dimension_numbers=("NHWC", "HWIO", "NHWC"),
        feature_group_count=p["groups"])
    y = y * p["scale"] + p["bias"]
    y = _apply_act(y, p["act"])
    return jnp.transpose(y, (0, 3, 1, 2))


if __name__ == "__main__":
    x = jax.random.normal(jax.random.PRNGKey(0), (2, 4, 16, 16), jnp.float32)   # NCHW

    modules = [
        # stem-style dense conv: 4 -> 32, 3x3, stride 2, pad 1, BN + SiLU
        make_conv_bn_act(1, 4, 32, k_size=3, stride_len=2, pad=1),
        # depthwise conv: 32 -> 32, 3x3, stride 1, pad 1, groups=32, BN + SiLU
        make_conv_bn_act(2, 32, 32, k_size=3, stride_len=1, pad=1, groupings=32),
        # 1x1 pointwise conv with bias, no BN, SiLU
        make_conv_bn_act(3, 32, 64, k_size=1, stride_len=1, pad=0,
                         use_bn=False, use_bias=True),
        # grouped conv fallback path: 64 -> 64, 3x3, groups=2
        make_conv_bn_act(4, 64, 64, k_size=3, stride_len=1, pad=1, groupings=2),
    ]

    cur = x
    for p in modules:
        out = jax.block_until_ready(conv_bn_act_forward(p, cur))
        ref = jax.block_until_ready(conv_bn_act_reference(p, cur))
        assert out.shape == ref.shape, (out.shape, ref.shape)
        assert bool(jnp.all(jnp.isfinite(out)))
        np.testing.assert_allclose(np.asarray(out), np.asarray(ref), rtol=1e-2, atol=1e-2)
        cur = out

    print("KERNEL_OK")
</pallas_src>

<mosaic_0001>
module attributes {stable_mosaic.version = 11 : i64} {
  func.func @_mm_bn_act_kernel(%arg0: i32, %arg1: memref<64x36xbf16, #tpu.memory_space<vmem>>, %arg2: memref<36x32xbf16, #tpu.memory_space<vmem>>, %arg3: memref<1x32xf32, #tpu.memory_space<vmem>>, %arg4: memref<1x32xf32, #tpu.memory_space<vmem>>, %arg5: memref<64x32xf32, #tpu.memory_space<vmem>>) attributes {dimension_semantics = [#tpu.dimension_semantics<parallel>], iteration_bounds = array<i64: 2>, scalar_prefetch = 0 : i64, scratch_operands = 0 : i64, tpu.core_type = #tpu.core_type<tc>, window_params = [{transform_indices = @transform_0, window_bounds = array<i64: 64, 36>}, {pipeline_mode = #tpu.pipeline_mode<synchronous>, transform_indices = @transform_1, window_bounds = array<i64: 36, 32>}, {pipeline_mode = #tpu.pipeline_mode<synchronous>, transform_indices = @transform_2, window_bounds = array<i64: 1, 32>}, {pipeline_mode = #tpu.pipeline_mode<synchronous>, transform_indices = @transform_3, window_bounds = array<i64: 1, 32>}, {transform_indices = @transform_4, window_bounds = array<i64: 64, 32>}]} {
    %c0 = arith.constant 0 : index
    %c0_0 = arith.constant 0 : index
    %0 = vector.load %arg1[%c0, %c0_0] : memref<64x36xbf16, #tpu.memory_space<vmem>>, vector<64x36xbf16>
    %c0_1 = arith.constant 0 : index
    %c0_2 = arith.constant 0 : index
    %1 = vector.load %arg2[%c0_1, %c0_2] : memref<36x32xbf16, #tpu.memory_space<vmem>>, vector<36x32xbf16>
    %cst = arith.constant dense<0.000000e+00> : vector<64x32xf32>
    %2 = tpu.matmul %0, %1, %cst {dimension_numbers = #tpu.dot_dimension_numbers<[1], [0], [0], [1], [0, 0, 1, 1], [], []>} : vector<64x36xbf16>, vector<36x32xbf16>, vector<64x32xf32> -> vector<64x32xf32>
    %c0_3 = arith.constant 0 : index
    %c0_4 = arith.constant 0 : index
    %3 = vector.load %arg3[%c0_3, %c0_4] : memref<1x32xf32, #tpu.memory_space<vmem>>, vector<1x32xf32>
    %4 = vector.broadcast %3 : vector<1x32xf32> to vector<64x32xf32>
    %5 = arith.mulf %2, %4 : vector<64x32xf32>
    %c0_5 = arith.constant 0 : index
    %c0_6 = arith.constant 0 : index
    %6 = vector.load %arg4[%c0_5, %c0_6] : memref<1x32xf32, #tpu.memory_space<vmem>>, vector<1x32xf32>
    %7 = vector.broadcast %6 : vector<1x32xf32> to vector<64x32xf32>
    %8 = arith.addf %5, %7 : vector<64x32xf32>
    %9 = arith.negf %8 : vector<64x32xf32>
    %10 = math.exp %9 : vector<64x32xf32>
    %cst_7 = arith.constant 1.000000e+00 : f32
    %11 = vector.broadcast %cst_7 : f32 to vector<64x32xf32>
    %12 = arith.addf %11, %10 : vector<64x32xf32>
    %13 = arith.divf %11, %12 : vector<64x32xf32>
    %14 = arith.mulf %8, %13 : vector<64x32xf32>
    %c0_8 = arith.constant 0 : index
    %c0_9 = arith.constant 0 : index
    %15 = vector.load %arg5[%c0_8, %c0_9] : memref<64x32xf32, #tpu.memory_space<vmem>>, vector<64x32xf32>
    tpu.vector_store %arg5[%c0_8, %c0_9], %14 {strides = array<i32>} : memref<64x32xf32, #tpu.memory_space<vmem>>, vector<64x32xf32>,
    return
  }
  func.func @transform_0(%arg0: i32) -> (i32, i32) {
    %c0_i32 = arith.constant 0 : i32
    %c0_i32_0 = arith.constant 0 : i32
    return %arg0, %c0_i32 : i32, i32
  }
  func.func @transform_1(%arg0: i32) -> (i32, i32) {
    %c0_i32 = arith.constant 0 : i32
    %c0_i32_0 = arith.constant 0 : i32
    %c0_i32_1 = arith.constant 0 : i32
    return %c0_i32, %c0_i32_0 : i32, i32
  }
  func.func @transform_2(%arg0: i32) -> (i32, i32) {
    %c0_i32 = arith.constant 0 : i32
    %c0_i32_0 = arith.constant 0 : i32
    %c0_i32_1 = arith.constant 0 : i32
    return %c0_i32, %c0_i32_0 : i32, i32
  }
  func.func @transform_3(%arg0: i32) -> (i32, i32) {
    %c0_i32 = arith.constant 0 : i32
    %c0_i32_0 = arith.constant 0 : i32
    %c0_i32_1 = arith.constant 0 : i32
    return %c0_i32, %c0_i32_0 : i32, i32
  }
  func.func @transform_4(%arg0: i32) -> (i32, i32) {
    %c0_i32 = arith.constant 0 : i32
    %c0_i32_0 = arith.constant 0 : i32
    return %arg0, %c0_i32 : i32, i32
  }
}

</mosaic_0001>

<llo_original>
// kernel: tpu_custom_call.1
$region0: #{tpu_custom_call.1}
  #allocation0 [shape = 'u32[]', space=smem, size = 0x4, offset = 0x4, fixed_abs, tag = 'smem constant byte address 0x4 - core index']
  #allocation1 [shape = 'u32[72,128]{1,0:T(1,128)}', space=vmem, size = 0x9000, scoped, tag = 'internal scratch']
  %s0 = inlined_call_operand.vmem [shape: bf16[128,36], index: 0, kind: input, shape index: {}]
  %s1 = inlined_call_operand.vmem [shape: bf16[36,32], index: 1, kind: input, shape index: {}]
  %s2 = inlined_call_operand.vmem [shape: f32[1,32], index: 2, kind: input, shape index: {}]
  %s3 = inlined_call_operand.vmem [shape: f32[1,32], index: 3, kind: input, shape index: {}]
  %s4 = inlined_call_operand.vmem [shape: f32[128,32], index: 4, kind: output, shape index: {}]
  %s5 = sld [smem:[#allocation0]]
  $region49: #{tpu_custom_call.1} parent=0
    _
  %s7 = ssub.s32 1, %s5
  %s8 = scalar_select 0, %s7, %s5
  loop: start=0, step=1, limit=4
  $region2: #{tpu_custom_call.1} parent=0 // loop_pre_header
    _
  $region3: #{tpu_custom_call.1} parent=0 // loop_header
    %s10 = sphi 0, %s14
    %p11 = scmp.ge.s32.totalorder %s10, 4
    %s20 = sphi 0, %s22
    %s23 = sphi 0, %s20
    %s24 = sphi 0, %s23
    %s40 = sphi 0, %s24
    %s44 = sphi 0, %s44
    %s46 = sphi 0, %s44
    %s47 = sphi 0, %s46
    %s61 = sphi 0, %s47
    %s65 = sphi 0, %s65
    %s67 = sphi 0, %s65
    %s68 = sphi 0, %s67
    %s82 = sphi 0, %s68
    %s86 = sphi 0, %s86
    %s88 = sphi 0, %s86
    %s89 = sphi 0, %s88
    %s103 = sphi 0, %s89
    %s109 = sphi 0, %s111
    %s112 = sphi 0, %s109
    %s113 = sphi 0, %s112
    %s129 = sphi 0, %s113
  $region4: #{tpu_custom_call.1} parent=0 // loop_header_branch
    %13 = sbr.rel (%p11) target = $region8
  $region5: #{tpu_custom_call.1} parent=0 // loop_body
    %s15 = ssub.s32 %s10, 1
    %s16 = ssub.s32 %s10, 2
    %s17 = sadd.s32 %s10, 1
    %s18 = ssub.s32 %s10, %s17
    %p19 = scmp.eq.s32.totalorder %s18, 0
    %s21 = sadd.s32 %s20, 1
    %s22 = scalar_select %p19, %s20, %s21
    %p25 = pneg %p19
    %p26 = scmp.eq.s32.totalorder %s10, 1
    %p27 = por %p25, %p26
    %p28 = scmp.ne.s32.totalorder %s20, %s23
    %p29 = scmp.eq.s32.totalorder %s10, 0
    %p30 = por %p28, %p29
    %p31 = scmp.ne.s32.totalorder %s20, %s23
    %p32 = scmp.eq.s32.totalorder %s15, 1
    %p33 = por %p31, %p32
    %p34 = scmp.ne.s32.totalorder %s23, %s24
    %p35 = scmp.eq.s32.totalorder %s15, 0
    %p36 = por %p34, %p35
    %p37 = scmp.ne.s32.totalorder %s23, %s24
    %p38 = scmp.eq.s32.totalorder %s16, 1
    %p39 = por %p37, %p38
    %p41 = scmp.ne.s32.totalorder %s24, %s40
    %p42 = scmp.eq.s32.totalorder %s16, 0
    %p43 = por %p41, %p42
    %s45 = sadd.s32 %s44, 1
    %p48 = scmp.eq.s32.totalorder %s10, 1
    %p49 = scmp.ne.s32.totalorder %s44, %s46
    %p50 = scmp.eq.s32.totalorder %s10, 0
    %p51 = por %p49, %p50
    %p52 = scmp.ne.s32.totalorder %s44, %s46
    %p53 = scmp.eq.s32.totalorder %s15, 1
    %p54 = por %p52, %p53
    %p55 = scmp.ne.s32.totalorder %s46, %s47
    %p56 = scmp.eq.s32.totalorder %s15, 0
    %p57 = por %p55, %p56
    %p58 = scmp.ne.s32.totalorder %s46, %s47
    %p59 = scmp.eq.s32.totalorder %s16, 1
    %p60 = por %p58, %p59
    %p62 = scmp.ne.s32.totalorder %s47, %s61
    %p63 = scmp.eq.s32.totalorder %s16, 0
    %p64 = por %p62, %p63
    %s66 = sadd.s32 %s65, 1
    %p69 = scmp.eq.s32.totalorder %s10, 1
    %p70 = scmp.ne.s32.totalorder %s65, %s67
    %p71 = scmp.eq.s32.totalorder %s10, 0
    %p72 = por %p70, %p71
    %p73 = scmp.ne.s32.totalorder %s65, %s67
    %p74 = scmp.eq.s32.totalorder %s15, 1
    %p75 = por %p73, %p74
    %p76 = scmp.ne.s32.totalorder %s67, %s68
    %p77 = scmp.eq.s32.totalorder %s15, 0
    %p78 = por %p76, %p77
    %p79 = scmp.ne.s32.totalorder %s67, %s68
    %p80 = scmp.eq.s32.totalorder %s16, 1
    %p81 = por %p79, %p80
    %p83 = scmp.ne.s32.totalorder %s68, %s82
    %p84 = scmp.eq.s32.totalorder %s16, 0
    %p85 = por %p83, %p84
    %s87 = sadd.s32 %s86, 1
    %p90 = scmp.eq.s32.totalorder %s10, 1
    %p91 = scmp.ne.s32.totalorder %s86, %s88
    %p92 = scmp.eq.s32.totalorder %s10, 0
    %p93 = por %p91, %p92
    %p94 = scmp.ne.s32.totalorder %s86, %s88
    %p95 = scmp.eq.s32.totalorder %s15, 1
    %p96 = por %p94, %p95
    %p97 = scmp.ne.s32.totalorder %s88, %s89
    %p98 = scmp.eq.s32.totalorder %s15, 0
    %p99 = por %p97, %p98
    %p100 = scmp.ne.s32.totalorder %s88, %s89
    %p101 = scmp.eq.s32.totalorder %s16, 1
    %p102 = por %p100, %p101
    %p104 = scmp.ne.s32.totalorder %s89, %s103
    %p105 = scmp.eq.s32.totalorder %s16, 0
    %p106 = por %p104, %p105
    %s107 = ssub.s32 %s10, %s17
    %p108 = scmp.eq.s32.totalorder %s107, 0
    %s110 = sadd.s32 %s109, 1
    %s111 = scalar_select %p108, %s109, %s110
    %p114 = pneg %p108
    %p115 = scmp.eq.s32.totalorder %s10, 1
    %p116 = por %p114, %p115
    %p117 = scmp.ne.s32.totalorder %s109, %s112
    %p118 = scmp.eq.s32.totalorder %s10, 0
    %p119 = por %p117, %p118
    %p120 = scmp.ne.s32.totalorder %s109, %s112
    %p121 = scmp.eq.s32.totalorder %s15, 1
    %p122 = por %p120, %p121
    %p123 = scmp.ne.s32.totalorder %s112, %s113
    %p124 = scmp.eq.s32.totalorder %s15, 0
    %p125 = por %p123, %p124
    %p126 = scmp.ne.s32.totalorder %s112, %s113
    %p127 = scmp.eq.s32.totalorder %s16, 1
    %p128 = por %p126, %p127
    %p130 = scmp.ne.s32.totalorder %s113, %s129
    %p131 = scmp.eq.s32.totalorder %s16, 0
    %p132 = por %p130, %p131
    %p133 = scmp.le.s32.totalorder 1, %s10
    %p134 = scmp.lt.s32.totalorder %s10, 3
    %p135 = pnand %p133, %p134
    %p136 = pneg %p135
    // Predicated region
    $region9: #{tpu_custom_call.1} parent=5 // pred_check
      _
    $region10: #{tpu_custom_call.1} parent=5 // pred_check_branch
      %138 = sbr.rel (%p135) target = $region12
    $region11: #{tpu_custom_call.1} parent=5 // pred_region
      %s139 = ssub.s32 %s10, 1
      // Predicated region
      $region13: #{tpu_custom_call.1} parent=11 // pred_check
        %p140 = pneg %p57
      $region14: #{tpu_custom_call.1} parent=11 // pred_check_branch
        %142 = sbr.rel (%p140) target = $region16
      $region15: #{tpu_custom_call.1} parent=11 // pred_region
        _
      $region16: #{tpu_custom_call.1} parent=11 // pred_fallthru
        _
      // Predicated region
      $region17: #{tpu_custom_call.1} parent=11 // pred_check
        %p143 = pneg %p78
      $region18: #{tpu_custom_call.1} parent=11 // pred_check_branch
        %145 = sbr.rel (%p143) target = $region20
      $region19: #{tpu_custom_call.1} parent=11 // pred_region
        _
      $region20: #{tpu_custom_call.1} parent=11 // pred_fallthru
        _
      // Predicated region
      $region21: #{tpu_custom_call.1} parent=11 // pred_check
        %p146 = pneg %p99
      $region22: #{tpu_custom_call.1} parent=11 // pred_check_branch
        %148 = sbr.rel (%p146) target = $region24
      $region23: #{tpu_custom_call.1} parent=11 // pred_region
        _
      $region24: #{tpu_custom_call.1} parent=11 // pred_fallthru
        _
    $region12: #{tpu_custom_call.1} parent=5 // pred_fallthru
      _
    %p149 = scmp.lt.s32.totalorder %s10, 2
    // Predicated region
    $region25: #{tpu_custom_call.1} parent=5 // pred_check
      %p150 = pneg %p149
    $region26: #{tpu_custom_call.1} parent=5 // pred_check_branch
      %152 = sbr.rel (%p150) target = $region28
    $region27: #{tpu_custom_call.1} parent=5 // pred_region
      // Predicated region
      $region29: #{tpu_custom_call.1} parent=27 // pred_check
        %p153 = pneg %p30
      $region30: #{tpu_custom_call.1} parent=27 // pred_check_branch
        %155 = sbr.rel (%p153) target = $region32
      $region31: #{tpu_custom_call.1} parent=27 // pred_region
        %s156 = smul.u32 8, %s10
        %p157 = scmp.lt.s32.totalorder %s156, 15
        %s158 = scalar_select %p157, %s156, 15
        %s159 = smul.addr %s158, 4
        %s160 = scalar_lea.vmem %s0, %s159
        %s161 = smul.u32 8, %s10
      $region32: #{tpu_custom_call.1} parent=27 // pred_fallthru
        _
    $region28: #{tpu_custom_call.1} parent=5 // pred_fallthru
      _
    %p162 = scmp.le.s32.totalorder 1, %s10
    %p163 = scmp.lt.s32.totalorder %s10, 3
    %p164 = pnand %p162, %p163
    %p165 = pneg %p164
    // Predicated region
    $region33: #{tpu_custom_call.1} parent=5 // pred_check
      _
    $region34: #{tpu_custom_call.1} parent=5 // pred_check_branch
      %167 = sbr.rel (%p164) target = $region36
    $region35: #{tpu_custom_call.1} parent=5 // pred_region
      %s168 = ssub.s32 %s10, 1
      %s169 = smul.u32 8, %s15
      %p170 = scmp.lt.s32.totalorder %s169, 15
      %s171 = scalar_select %p170, %s169, 15
      %s172 = smul.addr %s171, 4
      %s173 = scalar_lea.vmem %s0, %s172
      %p174 = pneg %p36
      %p175 = pneg %p33
      %p176 = pneg %p57
      %p177 = pneg %p54
      %p178 = pneg %p78
      %p179 = pneg %p75
      %p180 = pneg %p99
      %p181 = pneg %p96
      %p182 = pneg %p125
      %p183 = pneg %p122
      %s184 = smul.u32 8, %s15
      %p185 = scmp.lt.s32.totalorder %s184, 15
      %s186 = scalar_select %p185, %s184, 15
      %s187 = smul.addr %s186, 8
      %s188 = scalar_lea.vmem %s4, %s187
      %s189 = smul.u32 8, %s15
      %p190 = scmp.lt.s32.totalorder %s189, 15
      %s191 = scalar_select %p190, %s189, 15
      %s192 = smul.addr %s191, 4
      %s193 = scalar_lea.vmem %s0, %s192
      %s194 = smul.u32 8, %s15
      %s195 = smul.u32 8, %s15
      %p196 = scmp.lt.s32.totalorder %s195, 15
      %s197 = scalar_select %p196, %s195, 15
      %s198 = smul.addr %s197, 8
      %s199 = scalar_lea.vmem %s4, %s198
      %s200 = smul.u32 8, %s15
      %v202 = vld [vmem:[%s193] sm:$0xf]
      %v203 = vld [vmem:[%s193 + $0x4] sm:$0xf]
      %v204 = vld [vmem:[%s193 + $0x8] sm:$0xf]
      %v205 = vld [vmem:[%s193 + $0xc] sm:$0xf]
      %v206 = vld [vmem:[%s193 + $0x10] sm:$0xf]
      %v207 = vld [vmem:[%s193 + $0x14] sm:$0xf]
      %v208 = vld [vmem:[%s193 + $0x18] sm:$0xf]
      %v209 = vld [vmem:[%s193 + $0x1c] sm:$0xf]
      %v210 = vld [vmem:[%s1] sm:$0xf]
      %v211 = vld [vmem:[%s1 + $0x4] sm:$0xf]
      %v212 = vld [vmem:[%s1 + $0x8] sm:$0xf]
      %v213 = vld [vmem:[%s1 + $0xc] sm:$0xf]
      %v214 = vld [vmem:[%s1 + $0x10] sm:$0x3]
      %v223 = vunpack.c.l.b16 %v202
      %v224 = vunpack.c.l.b16 %v203
      %v225 = vunpack.c.l.b16 %v204
      %v226 = vunpack.c.l.b16 %v205
      %v227 = vunpack.c.l.b16 %v206
      %v228 = vunpack.c.l.b16 %v207
      %v229 = vunpack.c.l.b16 %v208
      %v230 = vunpack.c.l.b16 %v209
      %v231 = vpack.c.b16 %v224, %v223
      %v232 = vpack.c.b16 %v226, %v225
      %v233 = vpack.c.b16 %v228, %v227
      %v234 = vpack.c.b16 %v230, %v229
      %v240 = vunpack.c.l.b16 %v210
      %v241 = vunpack.c.l.b16 %v211
      %v242 = vunpack.c.l.b16 %v212
      %v243 = vunpack.c.l.b16 %v213
      %v244 = vunpack.c.l.b16 %v214
      %v245 = vpack.c.b16 %v241, %v240
      %v246 = vpack.c.b16 %v243, %v242
      %v247 = vpack.c.b16 %v244, %v244
      %vm250 = vcmask 293888
      %v252 = vsel %vm250, %v231, 0
      %v255 = vsel %vm250, %v232, 0
      %v258 = vsel %vm250, %v233, 0
      %v261 = vsel %vm250, %v234, 0
      %vm263 = vcmask 1041408
      %v265 = vsel %vm263, %v247, 0
      %267 = vmatpush.bf16.msra.mxu0 0
      %268 = vmatpush.bf16.msra.mxu0 0
      %269 = vmatpush.bf16.msra.mxu0 0
      %270 = vmatpush.bf16.msra.mxu0 0
      %271 = vmatpush.bf16.msra.mxu0 0
      %272 = vmatpush.bf16.msra.mxu0 %v265
      %273 = vmatpush.bf16.msra.mxu0 %v246
      %274 = vmatpush.bf16.msra.mxu0 %v245
      %275 = vmatmul.bf16.gmra.mxu0 %v252
      %v276 = vpop.f32.mrf.mxu0
      %v277 = vadd.f32 0.0, %v276
      %v278 = vpop.f32.mrf.mxu0
      %v279 = vadd.f32 0.0, %v278
      %280 = vmatmul.bf16.gmra.mxu0 %v255
      %v281 = vpop.f32.mrf.mxu0
      %v282 = vadd.f32 0.0, %v281
      %v283 = vpop.f32.mrf.mxu0
      %v284 = vadd.f32 0.0, %v283
      %285 = vmatmul.bf16.gmra.mxu0 %v258
      %v286 = vpop.f32.mrf.mxu0
      %v287 = vadd.f32 0.0, %v286
      %v288 = vpop.f32.mrf.mxu0
      %v289 = vadd.f32 0.0, %v288
      %290 = vmatmul.bf16.gmra.mxu0 %v261
      %v291 = vpop.f32.mrf.mxu0
      %v292 = vadd.f32 0.0, %v291
      %v293 = vpop.f32.mrf.mxu0
      %v294 = vadd.f32 0.0, %v293
      %295 = vdwg.mxu0
      %v296 = vld [vmem:[%s2] sm:$0x1]
      %v298 = vperm.slane %v296, 0
      %v300 = vmul.f32 %v277, %v298
      %v301 = vmul.f32 %v279, %v298
      %v302 = vmul.f32 %v282, %v298
      %v303 = vmul.f32 %v284, %v298
      %v304 = vmul.f32 %v287, %v298
      %v305 = vmul.f32 %v289, %v298
      %v306 = vmul.f32 %v292, %v298
      %v307 = vmul.f32 %v294, %v298
      %v308 = vld [vmem:[%s3] sm:$0x1]
      %v310 = vperm.slane %v308, 0
      %v312 = vadd.f32 %v300, %v310
      %v313 = vadd.f32 %v301, %v310
      %v314 = vadd.f32 %v302, %v310
      %v315 = vadd.f32 %v303, %v310
      %v316 = vadd.f32 %v304, %v310
      %v317 = vadd.f32 %v305, %v310
      %v318 = vadd.f32 %v306, %v310
      %v319 = vadd.f32 %v307, %v310
      %v320 = vxor.u32 %v312, 2147483648
      %v321 = vxor.u32 %v313, 2147483648
      %v322 = vxor.u32 %v314, 2147483648
      %v323 = vxor.u32 %v315, 2147483648
      %v324 = vxor.u32 %v316, 2147483648
      %v325 = vxor.u32 %v317, 2147483648
      %v326 = vxor.u32 %v318, 2147483648
      %v327 = vxor.u32 %v319, 2147483648
      %v328 = vmul.f32 %v320, 1.442695
      %v329 = vpow.pop %v328
      %v330 = vmul.f32 %v321, 1.442695
      %v331 = vpow.pop %v330
      %v332 = vmul.f32 %v322, 1.442695
      %v333 = vpow.pop %v332
      %v334 = vmul.f32 %v323, 1.442695
      %v335 = vpow.pop %v334
      %v336 = vmul.f32 %v324, 1.442695
      %v337 = vpow.pop %v336
      %v338 = vmul.f32 %v325, 1.442695
      %v339 = vpow.pop %v338
      %v340 = vmul.f32 %v326, 1.442695
      %v341 = vpow.pop %v340
      %v342 = vmul.f32 %v327, 1.442695
      %v343 = vpow.pop %v342
      %v344 = vadd.f32 %v329, 1.0
      %v345 = vadd.f32 %v331, 1.0
      %v346 = vadd.f32 %v333, 1.0
      %v347 = vadd.f32 %v335, 1.0
      %v348 = vadd.f32 %v337, 1.0
      %v349 = vadd.f32 %v339, 1.0
      %v350 = vadd.f32 %v341, 1.0
      %v351 = vadd.f32 %v343, 1.0
      %v352 = vrcp.pop %v344
      %v353 = vmul.f32 %v344, %v352
      %v354 = vsub.f32 1.0, %v353
      %v355 = vmul.f32 %v352, %v354
      %v356 = vadd.f32 %v352, %v355
      %vm357 = vweird.f32 %v344
      %vm358 = vweird.f32 %v352
      %vm359 = vmor %vm357, %vm358
      %v360 = vsel %vm359, %v352, %v356
      %v361 = vand.u32 2147483647, %v344
      %vm362 = vcmp.eq.f32.partialorder %v361, 8.507059e+37
      %v363 = vand.u32 %v344, 2147483648
      %v364 = vor.u32 1.1754944e-38, %v363
      %v365 = vsel %vm362, %v364, %v360
      %v366 = vmul.f32 1.0, %v365
      %v367 = vrcp.pop %v345
      %v368 = vmul.f32 %v345, %v367
      %v369 = vsub.f32 1.0, %v368
      %v370 = vmul.f32 %v367, %v369
      %v371 = vadd.f32 %v367, %v370
      %vm372 = vweird.f32 %v345
      %vm373 = vweird.f32 %v367
      %vm374 = vmor %vm372, %vm373
      %v375 = vsel %vm374, %v367, %v371
      %v376 = vand.u32 2147483647, %v345
      %vm377 = vcmp.eq.f32.partialorder %v376, 8.507059e+37
      %v378 = vand.u32 %v345, 2147483648
      %v379 = vor.u32 1.1754944e-38, %v378
      %v380 = vsel %vm377, %v379, %v375
      %v381 = vmul.f32 1.0, %v380
      %v382 = vrcp.pop %v346
      %v383 = vmul.f32 %v346, %v382
      %v384 = vsub.f32 1.0, %v383
      %v385 = vmul.f32 %v382, %v384
      %v386 = vadd.f32 %v382, %v385
      %vm387 = vweird.f32 %v346
      %vm388 = vweird.f32 %v382
      %vm389 = vmor %vm387, %vm388
      %v390 = vsel %vm389, %v382, %v386
      %v391 = vand.u32 2147483647, %v346
      %vm392 = vcmp.eq.f32.partialorder %v391, 8.507059e+37
      %v393 = vand.u32 %v346, 2147483648
      %v394 = vor.u32 1.1754944e-38, %v393
      %v395 = vsel %vm392, %v394, %v390
      %v396 = vmul.f32 1.0, %v395
      %v397 = vrcp.pop %v347
      %v398 = vmul.f32 %v347, %v397
      %v399 = vsub.f32 1.0, %v398
      %v400 = vmul.f32 %v397, %v399
      %v401 = vadd.f32 %v397, %v400
      %vm402 = vweird.f32 %v347
      %vm403 = vweird.f32 %v397
      %vm404 = vmor %vm402, %vm403
      %v405 = vsel %vm404, %v397, %v401
      %v406 = vand.u32 2147483647, %v347
      %vm407 = vcmp.eq.f32.partialorder %v406, 8.507059e+37
      %v408 = vand.u32 %v347, 2147483648
      %v409 = vor.u32 1.1754944e-38, %v408
      %v410 = vsel %vm407, %v409, %v405
      %v411 = vmul.f32 1.0, %v410
      %v412 = vrcp.pop %v348
      %v413 = vmul.f32 %v348, %v412
      %v414 = vsub.f32 1.0, %v413
      %v415 = vmul.f32 %v412, %v414
      %v416 = vadd.f32 %v412, %v415
      %vm417 = vweird.f32 %v348
      %vm418 = vweird.f32 %v412
      %vm419 = vmor %vm417, %vm418
      %v420 = vsel %vm419, %v412, %v416
      %v421 = vand.u32 2147483647, %v348
      %vm422 = vcmp.eq.f32.partialorder %v421, 8.507059e+37
      %v423 = vand.u32 %v348, 2147483648
      %v424 = vor.u32 1.1754944e-38, %v423
      %v425 = vsel %vm422, %v424, %v420
      %v426 = vmul.f32 1.0, %v425
      %v427 = vrcp.pop %v349
      %v428 = vmul.f32 %v349, %v427
      %v429 = vsub.f32 1.0, %v428
      %v430 = vmul.f32 %v427, %v429
      %v431 = vadd.f32 %v427, %v430
      %vm432 = vweird.f32 %v349
      %vm433 = vweird.f32 %v427
      %vm434 = vmor %vm432, %vm433
      %v435 = vsel %vm434, %v427, %v431
      %v436 = vand.u32 2147483647, %v349
      %vm437 = vcmp.eq.f32.partialorder %v436, 8.507059e+37
      %v438 = vand.u32 %v349, 2147483648
      %v439 = vor.u32 1.1754944e-38, %v438
      %v440 = vsel %vm437, %v439, %v435
      %v441 = vmul.f32 1.0, %v440
      %v442 = vrcp.pop %v350
      %v443 = vmul.f32 %v350, %v442
      %v444 = vsub.f32 1.0, %v443
      %v445 = vmul.f32 %v442, %v444
      %v446 = vadd.f32 %v442, %v445
      %vm447 = vweird.f32 %v350
      %vm448 = vweird.f32 %v442
      %vm449 = vmor %vm447, %vm448
      %v450 = vsel %vm449, %v442, %v446
      %v451 = vand.u32 2147483647, %v350
      %vm452 = vcmp.eq.f32.partialorder %v451, 8.507059e+37
      %v453 = vand.u32 %v350, 2147483648
      %v454 = vor.u32 1.1754944e-38, %v453
      %v455 = vsel %vm452, %v454, %v450
      %v456 = vmul.f32 1.0, %v455
      %v457 = vrcp.pop %v351
      %v458 = vmul.f32 %v351, %v457
      %v459 = vsub.f32 1.0, %v458
      %v460 = vmul.f32 %v457, %v459
      %v461 = vadd.f32 %v457, %v460
      %vm462 = vweird.f32 %v351
      %vm463 = vweird.f32 %v457
      %vm464 = vmor %vm462, %vm463
      %v465 = vsel %vm464, %v457, %v461
      %v466 = vand.u32 2147483647, %v351
      %vm467 = vcmp.eq.f32.partialorder %v466, 8.507059e+37
      %v468 = vand.u32 %v351, 2147483648
      %v469 = vor.u32 1.1754944e-38, %v468
      %v470 = vsel %vm467, %v469, %v465
      %v471 = vmul.f32 1.0, %v470
      %v472 = vmul.f32 %v312, %v366
      %v473 = vmul.f32 %v313, %v381
      %v474 = vmul.f32 %v314, %v396
      %v475 = vmul.f32 %v315, %v411
      %v476 = vmul.f32 %v316, %v426
      %v477 = vmul.f32 %v317, %v441
      %v478 = vmul.f32 %v318, %v456
      %v479 = vmul.f32 %v319, %v471
      %vm480 = vcmask 261120
      %481 = vst.msk [vmem:[%s199] sm:$0xff] %vm480, %v472
      %482 = vst.msk [vmem:[%s199 + $0x8] sm:$0xff] %vm480, %v473
      %483 = vst.msk [vmem:[%s199 + $0x10] sm:$0xff] %vm480, %v474
      %484 = vst.msk [vmem:[%s199 + $0x18] sm:$0xff] %vm480, %v475
      %485 = vst.msk [vmem:[%s199 + $0x20] sm:$0xff] %vm480, %v476
      %486 = vst.msk [vmem:[%s199 + $0x28] sm:$0xff] %vm480, %v477
      %487 = vst.msk [vmem:[%s199 + $0x30] sm:$0xff] %vm480, %v478
      %488 = vst.msk [vmem:[%s199 + $0x38] sm:$0xff] %vm480, %v479
      %s489 = smul.u32 8, %s15
      %p490 = scmp.lt.s32.totalorder %s489, 15
      %s491 = scalar_select %p490, %s489, 15
      %s492 = smul.addr %s491, 8
      %s493 = scalar_lea.vmem %s4, %s492
      // Predicated region
      $region37: #{tpu_custom_call.1} parent=35 // pred_check
        %p494 = pneg %p122
      $region38: #{tpu_custom_call.1} parent=35 // pred_check_branch
        %496 = sbr.rel (%p494) target = $region40
      $region39: #{tpu_custom_call.1} parent=35 // pred_region
        %s497 = smul.u32 8, %s15
      $region40: #{tpu_custom_call.1} parent=35 // pred_fallthru
        _
    $region36: #{tpu_custom_call.1} parent=5 // pred_fallthru
      _
    %p498 = scmp.le.s32.totalorder 2, %s10
    // Predicated region
    $region41: #{tpu_custom_call.1} parent=5 // pred_check
      %p499 = pneg %p498
    $region42: #{tpu_custom_call.1} parent=5 // pred_check_branch
      %501 = sbr.rel (%p499) target = $region44
    $region43: #{tpu_custom_call.1} parent=5 // pred_region
      %s502 = ssub.s32 %s10, 2
      // Predicated region
      $region45: #{tpu_custom_call.1} parent=43 // pred_check
        %p503 = pneg %p128
      $region46: #{tpu_custom_call.1} parent=43 // pred_check_branch
        %505 = sbr.rel (%p503) target = $region48
      $region47: #{tpu_custom_call.1} parent=43 // pred_region
        %s506 = smul.u32 8, %s16
        %p507 = scmp.lt.s32.totalorder %s506, 15
        %s508 = scalar_select %p507, %s506, 15
        %s509 = smul.addr %s508, 8
        %s510 = scalar_lea.vmem %s4, %s509
      $region48: #{tpu_custom_call.1} parent=43 // pred_fallthru
        _
    $region44: #{tpu_custom_call.1} parent=5 // pred_fallthru
      _
  $region6: #{tpu_custom_call.1} parent=0 // loop_footer
    %s14 = sadd.s32 1, %s10
  $region7: #{tpu_custom_call.1} parent=0 // loop_footer_branch
    %9 = sbr.rel target = $region3
  $region8: #{tpu_custom_call.1} parent=0 // loop_exit
    _

</llo_original>
